<compile_context>
chip_gen: v5e
topology: v5e:2x2
jax: 0.10.0
libtpu: 0.0.40
codegen_flags: <defaults>
</compile_context>

<pallas_src>
import jax
import jax.numpy as jnp
from jax import lax
from jax.experimental import pallas as pl
from jax.experimental.pallas import tpu as pltpu

# Scaled-down dims for the self-test (module defaults: d_embedding=512, d_ff=2048).
D_EMB = 128
D_FF = 512
LN_EPS = 1e-5


def _ffn_kernel(x_ref, w1_ref, b1_ref, w2_ref, b2_ref, g_ref, beta_ref, o_ref):
    # x_ref:   (TM, D)  token tile (f32)
    # w1_ref:  (D, F)   conv1 weight, transposed & kernel-dim squeezed (bf16)
    # b1_ref:  (1, F)   conv1 bias (f32)
    # w2_ref:  (F, D)   conv2 weight, transposed & kernel-dim squeezed (bf16)
    # b2_ref:  (1, D)   conv2 bias (f32)
    # g_ref:   (1, D)   LayerNorm gamma (f32)
    # beta_ref:(1, D)   LayerNorm beta  (f32)
    # o_ref:   (TM, D)
    d = x_ref.shape[-1]
    inv_d = jnp.float32(1.0 / d)

    x = x_ref[...]  # f32 token tile, reused for the residual

    # conv1 (1x1) + ReLU: bf16 operands on the MXU, f32 accumulation.  The bf16
    # downcast is fused into the ReLU so the f32 (TM,F) activation dies here.
    h = jnp.dot(x.astype(jnp.bfloat16), w1_ref[...],
                preferred_element_type=jnp.float32)
    h = jnp.maximum(h + b1_ref[...], 0.0).astype(jnp.bfloat16)

    # conv2 (1x1): bf16 operands, f32 accumulation.
    y = jnp.dot(h, w2_ref[...], preferred_element_type=jnp.float32)

    # residual + LayerNorm over the embedding axis, all f32, divide-free.
    z = y + b2_ref[...] + x.astype(jnp.float32)
    mean = jnp.sum(z, axis=-1, keepdims=True) * inv_d
    zc = z - mean
    var = jnp.sum(zc * zc, axis=-1, keepdims=True) * inv_d
    norm = zc * lax.rsqrt(var + LN_EPS)
    o_ref[...] = (norm * g_ref[...] + beta_ref[...]).astype(o_ref.dtype)


def _vmem_config():
    """Generation-aware (tile budget, compiler vmem limit) in bytes."""
    try:
        phys = int(pltpu.get_tpu_info().vmem_capacity_bytes)
    except Exception:
        phys = 64 * 1024 * 1024                       # conservative (v7x-sized)
    # v5e/v6e (128 MiB physical) -> 96 MiB limit; v7x (64 MiB) -> 48 MiB limit.
    limit = min(96 * 1024 * 1024, (phys * 3) // 4)
    # Tile budget leaves headroom for compiler scratch / pipelining overheads:
    # 96 MiB -> 72 MiB (v5e/v6e), 48 MiB -> 32 MiB (v7x).
    budget = min((limit * 3) // 4, limit - 16 * 1024 * 1024)
    budget = max(budget, 8 * 1024 * 1024)
    return budget, limit


def _choose_tm(rows, d, f, budget):
    """Largest sublane-aligned row tile whose per-step footprint fits `budget`,
    capped so the grid has >= 2 steps (v7x megacore) whenever rows allow it."""
    if rows <= 8:
        return rows                       # single tile == full first dim: always legal
    tm = 8
    cand = 8
    while cand <= 4096:
        per_step = (
            8 * cand * d * 4              # x+out tiles (double-buffered f32) + f32 LN temps (y,z,zc,norm)
            + cand * f * 6                # f32 hidden + its bf16 copy coexisting at the ReLU downcast
            + cand * d * 2                # bf16 copy of x
            + 2 * d * f * 2               # resident bf16 weights (single-buffered)
        )
        if per_step > budget:
            break
        tm = cand
        cand *= 2
    # Guarantee >= 2 grid steps so v7x's two TensorCores both get work.
    # (~0.35 us extra per step on 1-TC v5e/v6e: negligible.)
    cap = (((rows + 1) // 2 + 7) // 8) * 8
    if cap >= rows:
        cap = max(8, ((rows - 1) // 8) * 8)
    return min(tm, cap)


def poswise_ffn(inputs, w1, b1, w2, b2, gamma, beta, *, tm=None):
    """inputs: [B, S, D] float32.  Returns [B, S, D] (same dtype as inputs)."""
    B, S, D = inputs.shape
    F = w1.shape[1]
    assert w1.shape == (D, F) and w2.shape == (F, D)

    rows = B * S
    x2d = inputs.reshape(rows, D)

    budget, vmem_limit = _vmem_config()
    if tm is None:
        tm = _choose_tm(rows, D, F, budget)

    # Ragged last block handled by Pallas (masked boundary DMA/stores); no
    # host-side zero-padding copy of the input.  Matmuls and LayerNorm are
    # strictly per-row, so garbage in padded rows never touches valid rows.
    n_tiles = -(-rows // tm)

    # bf16 weights for the MXU; biases / LN params stay f32 for the epilogue.
    w1_bf = w1.astype(jnp.bfloat16)
    w2_bf = w2.astype(jnp.bfloat16)

    resident = dict(pipeline_mode=pl.Buffered(1))  # constant-index blocks: single-buffer

    cost = pl.CostEstimate(
        flops=4 * rows * D * F,                        # two matmuls
        transcendentals=rows,                          # one rsqrt per row
        bytes_accessed=2 * rows * D * 4                # x in + out (f32)
        + 2 * D * F * 2                                # bf16 weights
        + (2 * F + 6 * D) * 4,                         # biases + LN params
    )

    out2d = pl.pallas_call(
        _ffn_kernel,
        out_shape=jax.ShapeDtypeStruct((rows, D), inputs.dtype),
        grid_spec=pl.GridSpec(
            grid=(n_tiles,),
            in_specs=[
                pl.BlockSpec((tm, D), lambda i: (i, 0)),                 # x tile
                pl.BlockSpec((D, F), lambda i: (0, 0), **resident),      # W1 (resident)
                pl.BlockSpec((1, F), lambda i: (0, 0), **resident),      # b1
                pl.BlockSpec((F, D), lambda i: (0, 0), **resident),      # W2 (resident)
                pl.BlockSpec((1, D), lambda i: (0, 0), **resident),      # b2
                pl.BlockSpec((1, D), lambda i: (0, 0), **resident),      # gamma
                pl.BlockSpec((1, D), lambda i: (0, 0), **resident),      # beta
            ],
            out_specs=pl.BlockSpec((tm, D), lambda i: (i, 0)),
        ),
        compiler_params=pltpu.CompilerParams(
            dimension_semantics=("parallel",),          # shards token tiles across TCs (v7x)
            vmem_limit_bytes=vmem_limit,
        ),
        cost_estimate=cost,
    )(x2d, w1_bf, b1, w2_bf, b2, gamma, beta)

    return out2d.reshape(B, S, D)


def make_params(key, d=D_EMB, f=D_FF):
    """Deterministic parameter init mimicking nn.Conv1d / nn.LayerNorm shapes."""
    k1, k2, k3, k4 = jax.random.split(key, 4)
    # nn.Conv1d(in=d, out=f, k=1).weight: [f, d, 1]  -> stored as [d, f]
    lim1 = 1.0 / jnp.sqrt(d)
    w1 = jax.random.uniform(k1, (d, f), jnp.float32, -lim1, lim1)
    b1 = jax.random.uniform(k2, (1, f), jnp.float32, -lim1, lim1)
    # nn.Conv1d(in=f, out=d, k=1).weight: [d, f, 1]  -> stored as [f, d]
    lim2 = 1.0 / jnp.sqrt(f)
    w2 = jax.random.uniform(k3, (f, d), jnp.float32, -lim2, lim2)
    b2 = jax.random.uniform(k4, (1, d), jnp.float32, -lim2, lim2)
    # nn.LayerNorm(d): weight=1, bias=0
    gamma = jnp.ones((1, d), jnp.float32)
    beta = jnp.zeros((1, d), jnp.float32)
    return w1, b1, w2, b2, gamma, beta


def reference_ffn(inputs, w1, b1, w2, b2, gamma, beta):
    """Pure-JAX f32 reference mirroring the PyTorch forward."""
    h = jnp.maximum(jnp.einsum("bsd,df->bsf", inputs, w1) + b1[0], 0.0)
    y = jnp.einsum("bsf,fd->bsd", h, w2) + b2[0]
    z = y + inputs
    mean = jnp.mean(z, axis=-1, keepdims=True)
    var = jnp.mean((z - mean) ** 2, axis=-1, keepdims=True)
    return (z - mean) / jnp.sqrt(var + LN_EPS) * gamma[0] + beta[0]


if __name__ == "__main__":
    key = jax.random.PRNGKey(0)
    kx, kp, kx2 = jax.random.split(key, 3)

    params = make_params(kp)

    # Main small-shape check: auto TM -> 2 even tiles (both v7x TCs busy).
    B, S = 2, 8
    x = jax.random.normal(kx, (B, S, D_EMB), jnp.float32)
    out = jax.block_until_ready(poswise_ffn(x, *params))
    ref = reference_ffn(x, *params)
    assert out.shape == (B, S, D_EMB)
    # bf16 MXU operands (f32 accumulate, f32 LN epilogue) -> loosened tolerance.
    assert jnp.allclose(out, ref, atol=2e-2, rtol=2e-2), "mismatch vs reference"

    # Exercise the ragged multi-tile grid path (rows % tm != 0, no host padding).
    B2, S2 = 3, 37
    x2 = jax.random.normal(kx2, (B2, S2, D_EMB), jnp.float32)
    out2 = jax.block_until_ready(poswise_ffn(x2, *params, tm=32))
    ref2 = reference_ffn(x2, *params)
    assert out2.shape == (B2, S2, D_EMB)
    assert jnp.allclose(out2, ref2, atol=2e-2, rtol=2e-2), "mismatch vs reference (ragged)"

    print("KERNEL_OK")
</pallas_src>

<mosaic_0001>
module attributes {stable_mosaic.version = 11 : i64} {
  func.func @_ffn_kernel(%arg0: i32, %arg1: memref<8x128xf32, #tpu.memory_space<vmem>>, %arg2: memref<128x512xbf16, #tpu.memory_space<vmem>>, %arg3: memref<1x512xf32, #tpu.memory_space<vmem>>, %arg4: memref<512x128xbf16, #tpu.memory_space<vmem>>, %arg5: memref<1x128xf32, #tpu.memory_space<vmem>>, %arg6: memref<1x128xf32, #tpu.memory_space<vmem>>, %arg7: memref<1x128xf32, #tpu.memory_space<vmem>>, %arg8: memref<8x128xf32, #tpu.memory_space<vmem>>) attributes {dimension_semantics = [#tpu.dimension_semantics<parallel>], iteration_bounds = array<i64: 2>, scalar_prefetch = 0 : i64, scratch_operands = 0 : i64, tpu.core_type = #tpu.core_type<tc>, window_params = [{transform_indices = @transform_0, window_bounds = array<i64: 8, 128>}, {pipeline_mode = #tpu.pipeline_mode<synchronous>, transform_indices = @transform_1, window_bounds = array<i64: 128, 512>}, {pipeline_mode = #tpu.pipeline_mode<synchronous>, transform_indices = @transform_2, window_bounds = array<i64: 1, 512>}, {pipeline_mode = #tpu.pipeline_mode<synchronous>, transform_indices = @transform_3, window_bounds = array<i64: 512, 128>}, {pipeline_mode = #tpu.pipeline_mode<synchronous>, transform_indices = @transform_4, window_bounds = array<i64: 1, 128>}, {pipeline_mode = #tpu.pipeline_mode<synchronous>, transform_indices = @transform_5, window_bounds = array<i64: 1, 128>}, {pipeline_mode = #tpu.pipeline_mode<synchronous>, transform_indices = @transform_6, window_bounds = array<i64: 1, 128>}, {transform_indices = @transform_7, window_bounds = array<i64: 8, 128>}]} {
    %c0 = arith.constant 0 : index
    %c0_0 = arith.constant 0 : index
    %0 = vector.load %arg1[%c0, %c0_0] : memref<8x128xf32, #tpu.memory_space<vmem>>, vector<8x128xf32>
    %1 = arith.truncf %0 : vector<8x128xf32> to vector<8x128xbf16>
    %c0_1 = arith.constant 0 : index
    %c0_2 = arith.constant 0 : index
    %2 = vector.load %arg2[%c0_1, %c0_2] : memref<128x512xbf16, #tpu.memory_space<vmem>>, vector<128x512xbf16>
    %cst = arith.constant dense<0.000000e+00> : vector<8x512xf32>
    %3 = tpu.matmul %1, %2, %cst {dimension_numbers = #tpu.dot_dimension_numbers<[1], [0], [0], [1], [0, 0, 1, 1], [], []>} : vector<8x128xbf16>, vector<128x512xbf16>, vector<8x512xf32> -> vector<8x512xf32>
    %c0_3 = arith.constant 0 : index
    %c0_4 = arith.constant 0 : index
    %4 = vector.load %arg3[%c0_3, %c0_4] : memref<1x512xf32, #tpu.memory_space<vmem>>, vector<1x512xf32>
    %5 = vector.broadcast %4 : vector<1x512xf32> to vector<8x512xf32>
    %6 = arith.addf %3, %5 : vector<8x512xf32>
    %cst_5 = arith.constant 0.000000e+00 : f32
    %7 = vector.broadcast %cst_5 : f32 to vector<8x512xf32>
    %8 = arith.maximumf %6, %7 : vector<8x512xf32>
    %9 = arith.truncf %8 : vector<8x512xf32> to vector<8x512xbf16>
    %c0_6 = arith.constant 0 : index
    %c0_7 = arith.constant 0 : index
    %10 = vector.load %arg4[%c0_6, %c0_7] : memref<512x128xbf16, #tpu.memory_space<vmem>>, vector<512x128xbf16>
    %cst_8 = arith.constant dense<0.000000e+00> : vector<8x128xf32>
    %11 = tpu.matmul %9, %10, %cst_8 {dimension_numbers = #tpu.dot_dimension_numbers<[1], [0], [0], [1], [0, 0, 1, 1], [], []>} : vector<8x512xbf16>, vector<512x128xbf16>, vector<8x128xf32> -> vector<8x128xf32>
    %c0_9 = arith.constant 0 : index
    %c0_10 = arith.constant 0 : index
    %12 = vector.load %arg5[%c0_9, %c0_10] : memref<1x128xf32, #tpu.memory_space<vmem>>, vector<1x128xf32>
    %13 = vector.broadcast %12 : vector<1x128xf32> to vector<8x128xf32>
    %14 = arith.addf %11, %13 : vector<8x128xf32>
    %15 = arith.addf %14, %0 : vector<8x128xf32>
    %cst_11 = arith.constant dense<0.000000e+00> : vector<8xf32>
    %16 = vector.multi_reduction <add>, %15, %cst_11 [1] : vector<8x128xf32> to vector<8xf32>
    %17 = vector.shape_cast %16 : vector<8xf32> to vector<8x1xf32>
    %cst_12 = arith.constant 7.812500e-03 : f32
    %18 = vector.broadcast %cst_12 : f32 to vector<8x1xf32>
    %19 = arith.mulf %17, %18 : vector<8x1xf32>
    %20 = vector.broadcast %19 : vector<8x1xf32> to vector<8x128xf32>
    %21 = arith.subf %15, %20 : vector<8x128xf32>
    %22 = arith.mulf %21, %21 : vector<8x128xf32>
    %cst_13 = arith.constant dense<0.000000e+00> : vector<8xf32>
    %23 = vector.multi_reduction <add>, %22, %cst_13 [1] : vector<8x128xf32> to vector<8xf32>
    %24 = vector.shape_cast %23 : vector<8xf32> to vector<8x1xf32>
    %cst_14 = arith.constant 7.812500e-03 : f32
    %25 = vector.broadcast %cst_14 : f32 to vector<8x1xf32>
    %26 = arith.mulf %24, %25 : vector<8x1xf32>
    %cst_15 = arith.constant 9.99999974E-6 : f32
    %27 = vector.broadcast %cst_15 : f32 to vector<8x1xf32>
    %28 = arith.addf %26, %27 : vector<8x1xf32>
    %29 = math.rsqrt %28 : vector<8x1xf32>
    %30 = vector.broadcast %29 : vector<8x1xf32> to vector<8x128xf32>
    %31 = arith.mulf %21, %30 : vector<8x128xf32>
    %c0_16 = arith.constant 0 : index
    %c0_17 = arith.constant 0 : index
    %32 = vector.load %arg6[%c0_16, %c0_17] : memref<1x128xf32, #tpu.memory_space<vmem>>, vector<1x128xf32>
    %33 = vector.broadcast %32 : vector<1x128xf32> to vector<8x128xf32>
    %34 = arith.mulf %31, %33 : vector<8x128xf32>
    %c0_18 = arith.constant 0 : index
    %c0_19 = arith.constant 0 : index
    %35 = vector.load %arg7[%c0_18, %c0_19] : memref<1x128xf32, #tpu.memory_space<vmem>>, vector<1x128xf32>
    %36 = vector.broadcast %35 : vector<1x128xf32> to vector<8x128xf32>
    %37 = arith.addf %34, %36 : vector<8x128xf32>
    %c0_20 = arith.constant 0 : index
    %c0_21 = arith.constant 0 : index
    %38 = vector.load %arg8[%c0_20, %c0_21] : memref<8x128xf32, #tpu.memory_space<vmem>>, vector<8x128xf32>
    tpu.vector_store %arg8[%c0_20, %c0_21], %37 {strides = array<i32>} : memref<8x128xf32, #tpu.memory_space<vmem>>, vector<8x128xf32>,
    return
  }
  func.func @transform_0(%arg0: i32) -> (i32, i32) {
    %c0_i32 = arith.constant 0 : i32
    %c0_i32_0 = arith.constant 0 : i32
    return %arg0, %c0_i32 : i32, i32
  }
  func.func @transform_1(%arg0: i32) -> (i32, i32) {
    %c0_i32 = arith.constant 0 : i32
    %c0_i32_0 = arith.constant 0 : i32
    %c0_i32_1 = arith.constant 0 : i32
    return %c0_i32, %c0_i32_0 : i32, i32
  }
  func.func @transform_2(%arg0: i32) -> (i32, i32) {
    %c0_i32 = arith.constant 0 : i32
    %c0_i32_0 = arith.constant 0 : i32
    %c0_i32_1 = arith.constant 0 : i32
    return %c0_i32, %c0_i32_0 : i32, i32
  }
  func.func @transform_3(%arg0: i32) -> (i32, i32) {
    %c0_i32 = arith.constant 0 : i32
    %c0_i32_0 = arith.constant 0 : i32
    %c0_i32_1 = arith.constant 0 : i32
    return %c0_i32, %c0_i32_0 : i32, i32
  }
  func.func @transform_4(%arg0: i32) -> (i32, i32) {
    %c0_i32 = arith.constant 0 : i32
    %c0_i32_0 = arith.constant 0 : i32
    %c0_i32_1 = arith.constant 0 : i32
    return %c0_i32, %c0_i32_0 : i32, i32
  }
  func.func @transform_5(%arg0: i32) -> (i32, i32) {
    %c0_i32 = arith.constant 0 : i32
    %c0_i32_0 = arith.constant 0 : i32
    %c0_i32_1 = arith.constant 0 : i32
    return %c0_i32, %c0_i32_0 : i32, i32
  }
  func.func @transform_6(%arg0: i32) -> (i32, i32) {
    %c0_i32 = arith.constant 0 : i32
    %c0_i32_0 = arith.constant 0 : i32
    %c0_i32_1 = arith.constant 0 : i32
    return %c0_i32, %c0_i32_0 : i32, i32
  }
  func.func @transform_7(%arg0: i32) -> (i32, i32) {
    %c0_i32 = arith.constant 0 : i32
    %c0_i32_0 = arith.constant 0 : i32
    return %arg0, %c0_i32 : i32, i32
  }
}

</mosaic_0001>

<llo_original>
// kernel: tpu_custom_call.1
$region0: #{tpu_custom_call.1}
  #allocation0 [shape = 'u32[]', space=smem, size = 0x4, offset = 0x4, fixed_abs, tag = 'smem constant byte address 0x4 - core index']
  #allocation1 [shape = 'u32[72,128]{1,0:T(1,128)}', space=vmem, size = 0x9000, scoped, tag = 'internal scratch']
  %s0 = inlined_call_operand.hbm [shape: f32[16,128], index: 0, kind: input, shape index: {}]
  %s1 = inlined_call_operand.hbm [shape: bf16[128,512], index: 1, kind: input, shape index: {}]
  %s2 = inlined_call_operand.hbm [shape: f32[1,512], index: 2, kind: input, shape index: {}]
  %s3 = inlined_call_operand.hbm [shape: bf16[512,128], index: 3, kind: input, shape index: {}]
  %s4 = inlined_call_operand.vmem [shape: f32[1,128], index: 4, kind: input, shape index: {}]
  %s5 = inlined_call_operand.vmem [shape: f32[1,128], index: 5, kind: input, shape index: {}]
  %s6 = inlined_call_operand.vmem [shape: f32[1,128], index: 6, kind: input, shape index: {}]
  %s7 = inlined_call_operand.hbm [shape: f32[16,128], index: 7, kind: output, shape index: {}]
  %s8 = sld [smem:[#allocation0]]
  $region77: #{tpu_custom_call.1} parent=0
    _
  %s10 = ssub.s32 1, %s8
  %s11 = scalar_select 0, %s10, %s8
  $region1: #{tpu_custom_call.1} parent=0
    #allocation2 [shape = 'u8[8192]{0}', space=vmem, size = 0x2000, scoped, tag = 'input window, operand 0']
    #allocation3 [shape = 's32[2]{0}', space=sflag, size = 0x8, scoped, tag = 'scoped memory for tpu_custom_call.1']
    #allocation4 [shape = 's32[2]{0}', space=sflag, size = 0x8, scoped, tag = 'scoped memory for tpu_custom_call.1']
    #allocation5 [shape = 'u8[131072]{0}', space=vmem, size = 0x20000, scoped, tag = 'input window, operand 1, single buffered']
    #allocation6 [shape = 's32[1]{0}', space=sflag, size = 0x4, scoped, tag = 'scoped memory for tpu_custom_call.1']
    #allocation7 [shape = 'u8[2048]{0}', space=vmem, size = 0x800, scoped, tag = 'input window, operand 2, single buffered']
    #allocation8 [shape = 'u8[131072]{0}', space=vmem, size = 0x20000, scoped, tag = 'input window, operand 3, single buffered']
    #allocation9 [shape = 's32[1]{0}', space=sflag, size = 0x4, scoped, tag = 'scoped memory for tpu_custom_call.1']
    #allocation10 [shape = 'u8[8192]{0}', space=vmem, size = 0x2000, scoped, tag = 'output window, operand 0']
    %12 = vsyncpa [#allocation3], 0
    %s13 = scalar_lea.sflag [#allocation3], 1
    %14 = vsyncpa %s13, 0
    %15 = vsyncpa [#allocation6], 0
    %16 = vsyncpa [#allocation9], 0
    %17 = vsyncpa [#allocation4], 0
    %s18 = scalar_lea.sflag [#allocation4], 1
    %19 = vsyncpa %s18, 0
    loop: start=0, step=1, limit=4
    $region2: #{tpu_custom_call.1} parent=1 // loop_pre_header
      _
    $region3: #{tpu_custom_call.1} parent=1 // loop_header
      %s21 = sphi 0, %s25
      %p22 = scmp.ge.s32.totalorder %s21, 4
      %s31 = sphi 0, %s33
      %s34 = sphi 0, %s31
      %s35 = sphi 0, %s34
      %s51 = sphi 0, %s35
      %s55 = sphi 0, %s55
      %s57 = sphi 0, %s55
      %s58 = sphi 0, %s57
      %s72 = sphi 0, %s58
      %s76 = sphi 0, %s76
      %s78 = sphi 0, %s76
      %s79 = sphi 0, %s78
      %s93 = sphi 0, %s79
      %s97 = sphi 0, %s97
      %s99 = sphi 0, %s97
      %s100 = sphi 0, %s99
      %s114 = sphi 0, %s100
      %s118 = sphi 0, %s118
      %s120 = sphi 0, %s118
      %s121 = sphi 0, %s120
      %s135 = sphi 0, %s121
      %s139 = sphi 0, %s139
      %s141 = sphi 0, %s139
      %s142 = sphi 0, %s141
      %s156 = sphi 0, %s142
      %s160 = sphi 0, %s160
      %s162 = sphi 0, %s160
      %s163 = sphi 0, %s162
      %s177 = sphi 0, %s163
      %s183 = sphi 0, %s185
      %s186 = sphi 0, %s183
      %s187 = sphi 0, %s186
      %s203 = sphi 0, %s187
    $region4: #{tpu_custom_call.1} parent=1 // loop_header_branch
      %24 = sbr.rel (%p22) target = $region8
    $region5: #{tpu_custom_call.1} parent=1 // loop_body
      %s26 = ssub.s32 %s21, 1
      %s27 = ssub.s32 %s21, 2
      %s28 = sadd.s32 %s21, 1
      %s29 = ssub.s32 %s21, %s28
      %p30 = scmp.eq.s32.totalorder %s29, 0
      %s32 = sadd.s32 %s31, 1
      %s33 = scalar_select %p30, %s31, %s32
      %p36 = pneg %p30
      %p37 = scmp.eq.s32.totalorder %s21, 1
      %p38 = por %p36, %p37
      %p39 = scmp.ne.s32.totalorder %s31, %s34
      %p40 = scmp.eq.s32.totalorder %s21, 0
      %p41 = por %p39, %p40
      %p42 = scmp.ne.s32.totalorder %s31, %s34
      %p43 = scmp.eq.s32.totalorder %s26, 1
      %p44 = por %p42, %p43
      %p45 = scmp.ne.s32.totalorder %s34, %s35
      %p46 = scmp.eq.s32.totalorder %s26, 0
      %p47 = por %p45, %p46
      %p48 = scmp.ne.s32.totalorder %s34, %s35
      %p49 = scmp.eq.s32.totalorder %s27, 1
      %p50 = por %p48, %p49
      %p52 = scmp.ne.s32.totalorder %s35, %s51
      %p53 = scmp.eq.s32.totalorder %s27, 0
      %p54 = por %p52, %p53
      %s56 = sadd.s32 %s55, 1
      %p59 = scmp.eq.s32.totalorder %s21, 1
      %p60 = scmp.ne.s32.totalorder %s55, %s57
      %p61 = scmp.eq.s32.totalorder %s21, 0
      %p62 = por %p60, %p61
      %p63 = scmp.ne.s32.totalorder %s55, %s57
      %p64 = scmp.eq.s32.totalorder %s26, 1
      %p65 = por %p63, %p64
      %p66 = scmp.ne.s32.totalorder %s57, %s58
      %p67 = scmp.eq.s32.totalorder %s26, 0
      %p68 = por %p66, %p67
      %p69 = scmp.ne.s32.totalorder %s57, %s58
      %p70 = scmp.eq.s32.totalorder %s27, 1
      %p71 = por %p69, %p70
      %p73 = scmp.ne.s32.totalorder %s58, %s72
      %p74 = scmp.eq.s32.totalorder %s27, 0
      %p75 = por %p73, %p74
      %s77 = sadd.s32 %s76, 1
      %p80 = scmp.eq.s32.totalorder %s21, 1
      %p81 = scmp.ne.s32.totalorder %s76, %s78
      %p82 = scmp.eq.s32.totalorder %s21, 0
      %p83 = por %p81, %p82
      %p84 = scmp.ne.s32.totalorder %s76, %s78
      %p85 = scmp.eq.s32.totalorder %s26, 1
      %p86 = por %p84, %p85
      %p87 = scmp.ne.s32.totalorder %s78, %s79
      %p88 = scmp.eq.s32.totalorder %s26, 0
      %p89 = por %p87, %p88
      %p90 = scmp.ne.s32.totalorder %s78, %s79
      %p91 = scmp.eq.s32.totalorder %s27, 1
      %p92 = por %p90, %p91
      %p94 = scmp.ne.s32.totalorder %s79, %s93
      %p95 = scmp.eq.s32.totalorder %s27, 0
      %p96 = por %p94, %p95
      %s98 = sadd.s32 %s97, 1
      %p101 = scmp.eq.s32.totalorder %s21, 1
      %p102 = scmp.ne.s32.totalorder %s97, %s99
      %p103 = scmp.eq.s32.totalorder %s21, 0
      %p104 = por %p102, %p103
      %p105 = scmp.ne.s32.totalorder %s97, %s99
      %p106 = scmp.eq.s32.totalorder %s26, 1
      %p107 = por %p105, %p106
      %p108 = scmp.ne.s32.totalorder %s99, %s100
      %p109 = scmp.eq.s32.totalorder %s26, 0
      %p110 = por %p108, %p109
      %p111 = scmp.ne.s32.totalorder %s99, %s100
      %p112 = scmp.eq.s32.totalorder %s27, 1
      %p113 = por %p111, %p112
      %p115 = scmp.ne.s32.totalorder %s100, %s114
      %p116 = scmp.eq.s32.totalorder %s27, 0
      %p117 = por %p115, %p116
      %s119 = sadd.s32 %s118, 1
      %p122 = scmp.eq.s32.totalorder %s21, 1
      %p123 = scmp.ne.s32.totalorder %s118, %s120
      %p124 = scmp.eq.s32.totalorder %s21, 0
      %p125 = por %p123, %p124
      %p126 = scmp.ne.s32.totalorder %s118, %s120
      %p127 = scmp.eq.s32.totalorder %s26, 1
      %p128 = por %p126, %p127
      %p129 = scmp.ne.s32.totalorder %s120, %s121
      %p130 = scmp.eq.s32.totalorder %s26, 0
      %p131 = por %p129, %p130
      %p132 = scmp.ne.s32.totalorder %s120, %s121
      %p133 = scmp.eq.s32.totalorder %s27, 1
      %p134 = por %p132, %p133
      %p136 = scmp.ne.s32.totalorder %s121, %s135
      %p137 = scmp.eq.s32.totalorder %s27, 0
      %p138 = por %p136, %p137
      %s140 = sadd.s32 %s139, 1
      %p143 = scmp.eq.s32.totalorder %s21, 1
      %p144 = scmp.ne.s32.totalorder %s139, %s141
      %p145 = scmp.eq.s32.totalorder %s21, 0
      %p146 = por %p144, %p145
      %p147 = scmp.ne.s32.totalorder %s139, %s141
      %p148 = scmp.eq.s32.totalorder %s26, 1
      %p149 = por %p147, %p148
      %p150 = scmp.ne.s32.totalorder %s141, %s142
      %p151 = scmp.eq.s32.totalorder %s26, 0
      %p152 = por %p150, %p151
      %p153 = scmp.ne.s32.totalorder %s141, %s142
      %p154 = scmp.eq.s32.totalorder %s27, 1
      %p155 = por %p153, %p154
      %p157 = scmp.ne.s32.totalorder %s142, %s156
      %p158 = scmp.eq.s32.totalorder %s27, 0
      %p159 = por %p157, %p158
      %s161 = sadd.s32 %s160, 1
      %p164 = scmp.eq.s32.totalorder %s21, 1
      %p165 = scmp.ne.s32.totalorder %s160, %s162
      %p166 = scmp.eq.s32.totalorder %s21, 0
      %p167 = por %p165, %p166
      %p168 = scmp.ne.s32.totalorder %s160, %s162
      %p169 = scmp.eq.s32.totalorder %s26, 1
      %p170 = por %p168, %p169
      %p171 = scmp.ne.s32.totalorder %s162, %s163
      %p172 = scmp.eq.s32.totalorder %s26, 0
      %p173 = por %p171, %p172
      %p174 = scmp.ne.s32.totalorder %s162, %s163
      %p175 = scmp.eq.s32.totalorder %s27, 1
      %p176 = por %p174, %p175
      %p178 = scmp.ne.s32.totalorder %s163, %s177
      %p179 = scmp.eq.s32.totalorder %s27, 0
      %p180 = por %p178, %p179
      %s181 = ssub.s32 %s21, %s28
      %p182 = scmp.eq.s32.totalorder %s181, 0
      %s184 = sadd.s32 %s183, 1
      %s185 = scalar_select %p182, %s183, %s184
      %p188 = pneg %p182
      %p189 = scmp.eq.s32.totalorder %s21, 1
      %p190 = por %p188, %p189
      %p191 = scmp.ne.s32.totalorder %s183, %s186
      %p192 = scmp.eq.s32.totalorder %s21, 0
      %p193 = por %p191, %p192
      %p194 = scmp.ne.s32.totalorder %s183, %s186
      %p195 = scmp.eq.s32.totalorder %s26, 1
      %p196 = por %p194, %p195
      %p197 = scmp.ne.s32.totalorder %s186, %s187
      %p198 = scmp.eq.s32.totalorder %s26, 0
      %p199 = por %p197, %p198
      %p200 = scmp.ne.s32.totalorder %s186, %s187
      %p201 = scmp.eq.s32.totalorder %s27, 1
      %p202 = por %p200, %p201
      %p204 = scmp.ne.s32.totalorder %s187, %s203
      %p205 = scmp.eq.s32.totalorder %s27, 0
      %p206 = por %p204, %p205
      %p207 = scmp.le.s32.totalorder 1, %s21
      %p208 = scmp.lt.s32.totalorder %s21, 3
      %p209 = pnand %p207, %p208
      %p210 = pneg %p209
      // Predicated region
      $region9: #{tpu_custom_call.1} parent=5 // pred_check
        _
      $region10: #{tpu_custom_call.1} parent=5 // pred_check_branch
        %212 = sbr.rel (%p209) target = $region12
      $region11: #{tpu_custom_call.1} parent=5 // pred_region
        %s213 = ssub.s32 %s21, 1
        // Predicated region
        $region13: #{tpu_custom_call.1} parent=11 // pred_check
          %p214 = pneg %p68
        $region14: #{tpu_custom_call.1} parent=11 // pred_check_branch
          %216 = sbr.rel (%p214) target = $region16
        $region15: #{tpu_custom_call.1} parent=11 // pred_region
          %218 = vsyncadd [#allocation6], 0
          %s219 = sshll.u32 %s1, 4
          %s220 = int_to_ptr.hbm [resolvable:$true] %s219
          %s221 = sshll.u32 [#allocation5], 4
          %s222 = int_to_ptr.vmem [resolvable:$true] %s221
          %227 = dma.hbm_to_vmem [thread:$0]  %s220, 4096, %s222, [#allocation6], 256, 256, 16
        $region16: #{tpu_custom_call.1} parent=11 // pred_fallthru
          _
        // Predicated region
        $region17: #{tpu_custom_call.1} parent=11 // pred_check
          %p228 = pneg %p89
        $region18: #{tpu_custom_call.1} parent=11 // pred_check_branch
          %230 = sbr.rel (%p228) target = $region20
        $region19: #{tpu_custom_call.1} parent=11 // pred_region
          %232 = vsyncadd [#allocation6], 0
          %s234 = sshll.u32 %s2, 4
          %s235 = int_to_ptr.hbm [resolvable:$true] %s234
          %s236 = sshll.u32 [#allocation7], 4
          %s237 = int_to_ptr.vmem [resolvable:$true] %s236
          %239 = dma.hbm_to_vmem [thread:$0]  %s235, 64, %s237, [#allocation6]
        $region20: #{tpu_custom_call.1} parent=11 // pred_fallthru
          _
        // Predicated region
        $region21: #{tpu_custom_call.1} parent=11 // pred_check
          %p240 = pneg %p110
        $region22: #{tpu_custom_call.1} parent=11 // pred_check_branch
          %242 = sbr.rel (%p240) target = $region24
        $region23: #{tpu_custom_call.1} parent=11 // pred_region
          %244 = vsyncadd [#allocation9], 0
          %s245 = sshll.u32 %s3, 4
          %s246 = int_to_ptr.hbm [resolvable:$true] %s245
          %s247 = sshll.u32 [#allocation8], 4
          %s248 = int_to_ptr.vmem [resolvable:$true] %s247
          %253 = dma.hbm_to_vmem [thread:$0]  %s246, 4096, %s248, [#allocation9], 64, 64, 4
        $region24: #{tpu_custom_call.1} parent=11 // pred_fallthru
          _
        // Predicated region
        $region25: #{tpu_custom_call.1} parent=11 // pred_check
          %p254 = pneg %p131
        $region26: #{tpu_custom_call.1} parent=11 // pred_check_branch
          %256 = sbr.rel (%p254) target = $region28
        $region27: #{tpu_custom_call.1} parent=11 // pred_region
          _
        $region28: #{tpu_custom_call.1} parent=11 // pred_fallthru
          _
        // Predicated region
        $region29: #{tpu_custom_call.1} parent=11 // pred_check
          %p257 = pneg %p152
        $region30: #{tpu_custom_call.1} parent=11 // pred_check_branch
          %259 = sbr.rel (%p257) target = $region32
        $region31: #{tpu_custom_call.1} parent=11 // pred_region
          _
        $region32: #{tpu_custom_call.1} parent=11 // pred_fallthru
          _
        // Predicated region
        $region33: #{tpu_custom_call.1} parent=11 // pred_check
          %p260 = pneg %p173
        $region34: #{tpu_custom_call.1} parent=11 // pred_check_branch
          %262 = sbr.rel (%p260) target = $region36
        $region35: #{tpu_custom_call.1} parent=11 // pred_region
          _
        $region36: #{tpu_custom_call.1} parent=11 // pred_fallthru
          _
      $region12: #{tpu_custom_call.1} parent=5 // pred_fallthru
        _
      %p263 = scmp.lt.s32.totalorder %s21, 2
      // Predicated region
      $region37: #{tpu_custom_call.1} parent=5 // pred_check
        %p264 = pneg %p263
      $region38: #{tpu_custom_call.1} parent=5 // pred_check_branch
        %266 = sbr.rel (%p264) target = $region40
      $region39: #{tpu_custom_call.1} parent=5 // pred_region
        // Predicated region
        $region41: #{tpu_custom_call.1} parent=39 // pred_check
          %p267 = pneg %p41
        $region42: #{tpu_custom_call.1} parent=39 // pred_check_branch
          %269 = sbr.rel (%p267) target = $region44
        $region43: #{tpu_custom_call.1} parent=39 // pred_region
          %s270 = sand.u32 %s31, 1
          %s271 = scalar_lea.sflag [#allocation3], %s270
          %s272 = sand.u32 %s31, 1
          %s273 = smul.addr %s272, 8
          %s274 = scalar_lea.vmem [#allocation2], %s273
          %276 = vsyncadd %s271, 0
          %s277 = smul.addr %s21, 8
          %s278 = scalar_lea.hbm %s0, %s277
          %s280 = sshll.u32 %s278, 4
          %s281 = int_to_ptr.hbm [resolvable:$true] %s280
          %s282 = sshll.u32 %s274, 4
          %s283 = int_to_ptr.vmem [resolvable:$true] %s282
          %285 = dma.hbm_to_vmem [thread:$0]  %s281, 128, %s283, %s271
        $region44: #{tpu_custom_call.1} parent=39 // pred_fallthru
          _
      $region40: #{tpu_custom_call.1} parent=5 // pred_fallthru
        _
      %p286 = scmp.le.s32.totalorder 1, %s21
      %p287 = scmp.lt.s32.totalorder %s21, 3
      %p288 = pnand %p286, %p287
      %p289 = pneg %p288
      // Predicated region
      $region45: #{tpu_custom_call.1} parent=5 // pred_check
        _
      $region46: #{tpu_custom_call.1} parent=5 // pred_check_branch
        %291 = sbr.rel (%p288) target = $region48
      $region47: #{tpu_custom_call.1} parent=5 // pred_region
        %s292 = ssub.s32 %s21, 1
        %s293 = sand.u32 %s34, 1
        %s294 = scalar_lea.sflag [#allocation3], %s293
        %s295 = sand.u32 %s34, 1
        %s296 = smul.addr %s295, 8
        %s297 = scalar_lea.vmem [#allocation2], %s296
        // Predicated region
        $region49: #{tpu_custom_call.1} parent=47 // pred_check
          %p298 = pneg %p47
        $region50: #{tpu_custom_call.1} parent=47 // pred_check_branch
          %300 = sbr.rel (%p298) target = $region52
        $region51: #{tpu_custom_call.1} parent=47 // pred_region
          %302 = dma.done %s294, 128
        $region52: #{tpu_custom_call.1} parent=47 // pred_fallthru
          _
        // Predicated region
        $region53: #{tpu_custom_call.1} parent=47 // pred_check
          %p303 = pneg %p68
        $region54: #{tpu_custom_call.1} parent=47 // pred_check_branch
          %305 = sbr.rel (%p303) target = $region56
        $region55: #{tpu_custom_call.1} parent=47 // pred_region
          %307 = dma.done [#allocation6], 4096
        $region56: #{tpu_custom_call.1} parent=47 // pred_fallthru
          _
        // Predicated region
        $region57: #{tpu_custom_call.1} parent=47 // pred_check
          %p308 = pneg %p89
        $region58: #{tpu_custom_call.1} parent=47 // pred_check_branch
          %310 = sbr.rel (%p308) target = $region60
        $region59: #{tpu_custom_call.1} parent=47 // pred_region
          %312 = dma.done [#allocation6], 64
        $region60: #{tpu_custom_call.1} parent=47 // pred_fallthru
          _
        // Predicated region
        $region61: #{tpu_custom_call.1} parent=47 // pred_check
          %p313 = pneg %p110
        $region62: #{tpu_custom_call.1} parent=47 // pred_check_branch
          %315 = sbr.rel (%p313) target = $region64
        $region63: #{tpu_custom_call.1} parent=47 // pred_region
          %317 = dma.done [#allocation9], 4096
        $region64: #{tpu_custom_call.1} parent=47 // pred_fallthru
          _
        %s318 = sand.u32 %s34, 1
        %s319 = scalar_lea.sflag [#allocation3], %s318
        %s320 = sand.u32 %s34, 1
        %s321 = smul.addr %s320, 8
        %s322 = scalar_lea.vmem [#allocation2], %s321
        %p323 = pneg %p47
        %p324 = pneg %p44
        %p325 = pneg %p68
        %p326 = pneg %p65
        %p327 = pneg %p89
        %p328 = pneg %p86
        %p329 = pneg %p110
        %p330 = pneg %p107
        %p331 = pneg %p131
        %p332 = pneg %p128
        %p333 = pneg %p152
        %p334 = pneg %p149
        %p335 = pneg %p173
        %p336 = pneg %p170
        %p337 = pneg %p199
        %p338 = pneg %p196
        %s339 = sand.u32 %s186, 1
        %s340 = scalar_lea.sflag [#allocation4], %s339
        %s341 = sand.u32 %s186, 1
        %s342 = smul.addr %s341, 8
        %s343 = scalar_lea.vmem [#allocation10], %s342
        %v344 = vld [vmem:[%s297] sm:$0xff]
        %v345 = vpack.c.bf16 %v344, %v344
        %v346 = vld [vmem:[#allocation5] sm:$0xff]
        %v347 = vld [vmem:[#allocation5 + $0x8] sm:$0xff]
        %v348 = vld [vmem:[#allocation5 + $0x10] sm:$0xff]
        %v349 = vld [vmem:[#allocation5 + $0x18] sm:$0xff]
        %v350 = vld [vmem:[#allocation5 + $0x20] sm:$0xff]
        %v351 = vld [vmem:[#allocation5 + $0x28] sm:$0xff]
        %v352 = vld [vmem:[#allocation5 + $0x30] sm:$0xff]
        %v353 = vld [vmem:[#allocation5 + $0x38] sm:$0xff]
        %v354 = vld [vmem:[#allocation5 + $0x40] sm:$0xff]
        %v355 = vld [vmem:[#allocation5 + $0x48] sm:$0xff]
        %v356 = vld [vmem:[#allocation5 + $0x50] sm:$0xff]
        %v357 = vld [vmem:[#allocation5 + $0x58] sm:$0xff]
        %v358 = vld [vmem:[#allocation5 + $0x60] sm:$0xff]
        %v359 = vld [vmem:[#allocation5 + $0x68] sm:$0xff]
        %v360 = vld [vmem:[#allocation5 + $0x70] sm:$0xff]
        %v361 = vld [vmem:[#allocation5 + $0x78] sm:$0xff]
        %v362 = vld [vmem:[#allocation5 + $0x80] sm:$0xff]
        %v363 = vld [vmem:[#allocation5 + $0x88] sm:$0xff]
        %v364 = vld [vmem:[#allocation5 + $0x90] sm:$0xff]
        %v365 = vld [vmem:[#allocation5 + $0x98] sm:$0xff]
        %v366 = vld [vmem:[#allocation5 + $0xa0] sm:$0xff]
        %v367 = vld [vmem:[#allocation5 + $0xa8] sm:$0xff]
        %v368 = vld [vmem:[#allocation5 + $0xb0] sm:$0xff]
        %v369 = vld [vmem:[#allocation5 + $0xb8] sm:$0xff]
        %v370 = vld [vmem:[#allocation5 + $0xc0] sm:$0xff]
        %v371 = vld [vmem:[#allocation5 + $0xc8] sm:$0xff]
        %v372 = vld [vmem:[#allocation5 + $0xd0] sm:$0xff]
        %v373 = vld [vmem:[#allocation5 + $0xd8] sm:$0xff]
        %v374 = vld [vmem:[#allocation5 + $0xe0] sm:$0xff]
        %v375 = vld [vmem:[#allocation5 + $0xe8] sm:$0xff]
        %v376 = vld [vmem:[#allocation5 + $0xf0] sm:$0xff]
        %v377 = vld [vmem:[#allocation5 + $0xf8] sm:$0xff]
        %v378 = vld [vmem:[#allocation7] sm:$0xf]
        %v380 = vperm.slane %v378, 0
        %v381 = vperm.slane %v378, 1
        %v382 = vperm.slane %v378, 2
        %v383 = vperm.slane %v378, 3
        %v420 = vunpack.c.l.b16 %v346
        %v421 = vunpack.c.h.b16 %v346
        %v422 = vunpack.c.l.b16 %v347
        %v423 = vunpack.c.h.b16 %v347
        %v424 = vunpack.c.l.b16 %v348
        %v425 = vunpack.c.h.b16 %v348
        %v426 = vunpack.c.l.b16 %v349
        %v427 = vunpack.c.h.b16 %v349
        %v428 = vunpack.c.l.b16 %v350
        %v429 = vunpack.c.h.b16 %v350
        %v430 = vunpack.c.l.b16 %v351
        %v431 = vunpack.c.h.b16 %v351
        %v432 = vunpack.c.l.b16 %v352
        %v433 = vunpack.c.h.b16 %v352
        %v434 = vunpack.c.l.b16 %v353
        %v435 = vunpack.c.h.b16 %v353
        %v436 = vunpack.c.l.b16 %v354
        %v437 = vunpack.c.h.b16 %v354
        %v438 = vunpack.c.l.b16 %v355
        %v439 = vunpack.c.h.b16 %v355
        %v440 = vunpack.c.l.b16 %v356
        %v441 = vunpack.c.h.b16 %v356
        %v442 = vunpack.c.l.b16 %v357
        %v443 = vunpack.c.h.b16 %v357
        %v444 = vunpack.c.l.b16 %v358
        %v445 = vunpack.c.h.b16 %v358
        %v446 = vunpack.c.l.b16 %v359
        %v447 = vunpack.c.h.b16 %v359
        %v448 = vunpack.c.l.b16 %v360
        %v449 = vunpack.c.h.b16 %v360
        %v450 = vunpack.c.l.b16 %v361
        %v451 = vunpack.c.h.b16 %v361
        %v452 = vunpack.c.l.b16 %v362
        %v453 = vunpack.c.h.b16 %v362
        %v454 = vunpack.c.l.b16 %v363
        %v455 = vunpack.c.h.b16 %v363
        %v456 = vunpack.c.l.b16 %v364
        %v457 = vunpack.c.h.b16 %v364
        %v458 = vunpack.c.l.b16 %v365
        %v459 = vunpack.c.h.b16 %v365
        %v460 = vunpack.c.l.b16 %v366
        %v461 = vunpack.c.h.b16 %v366
        %v462 = vunpack.c.l.b16 %v367
        %v463 = vunpack.c.h.b16 %v367
        %v464 = vunpack.c.l.b16 %v368
        %v465 = vunpack.c.h.b16 %v368
        %v466 = vunpack.c.l.b16 %v369
        %v467 = vunpack.c.h.b16 %v369
        %v468 = vunpack.c.l.b16 %v370
        %v469 = vunpack.c.h.b16 %v370
        %v470 = vunpack.c.l.b16 %v371
        %v471 = vunpack.c.h.b16 %v371
        %v472 = vunpack.c.l.b16 %v372
        %v473 = vunpack.c.h.b16 %v372
        %v474 = vunpack.c.l.b16 %v373
        %v475 = vunpack.c.h.b16 %v373
        %v476 = vunpack.c.l.b16 %v374
        %v477 = vunpack.c.h.b16 %v374
        %v478 = vunpack.c.l.b16 %v375
        %v479 = vunpack.c.h.b16 %v375
        %v480 = vunpack.c.l.b16 %v376
        %v481 = vunpack.c.h.b16 %v376
        %v482 = vunpack.c.l.b16 %v377
        %v483 = vunpack.c.h.b16 %v377
        %v484 = vpack.c.b16 %v424, %v420
        %v485 = vpack.c.b16 %v425, %v421
        %v486 = vpack.c.b16 %v426, %v422
        %v487 = vpack.c.b16 %v427, %v423
        %v488 = vpack.c.b16 %v432, %v428
        %v489 = vpack.c.b16 %v433, %v429
        %v490 = vpack.c.b16 %v434, %v430
        %v491 = vpack.c.b16 %v435, %v431
        %v492 = vpack.c.b16 %v440, %v436
        %v493 = vpack.c.b16 %v441, %v437
        %v494 = vpack.c.b16 %v442, %v438
        %v495 = vpack.c.b16 %v443, %v439
        %v496 = vpack.c.b16 %v448, %v444
        %v497 = vpack.c.b16 %v449, %v445
        %v498 = vpack.c.b16 %v450, %v446
        %v499 = vpack.c.b16 %v451, %v447
        %v500 = vpack.c.b16 %v456, %v452
        %v501 = vpack.c.b16 %v457, %v453
        %v502 = vpack.c.b16 %v458, %v454
        %v503 = vpack.c.b16 %v459, %v455
        %v504 = vpack.c.b16 %v464, %v460
        %v505 = vpack.c.b16 %v465, %v461
        %v506 = vpack.c.b16 %v466, %v462
        %v507 = vpack.c.b16 %v467, %v463
        %v508 = vpack.c.b16 %v472, %v468
        %v509 = vpack.c.b16 %v473, %v469
        %v510 = vpack.c.b16 %v474, %v470
        %v511 = vpack.c.b16 %v475, %v471
        %v512 = vpack.c.b16 %v480, %v476
        %v513 = vpack.c.b16 %v481, %v477
        %v514 = vpack.c.b16 %v482, %v478
        %v515 = vpack.c.b16 %v483, %v479
        %548 = vmatpush.bf16.msra.mxu0 %v512
        %549 = vmatpush.bf16.msra.mxu0 %v508
        %550 = vmatpush.bf16.msra.mxu0 %v504
        %551 = vmatpush.bf16.msra.mxu0 %v500
        %552 = vmatpush.bf16.msra.mxu0 %v496
        %553 = vmatpush.bf16.msra.mxu0 %v492
        %554 = vmatpush.bf16.msra.mxu0 %v488
        %555 = vmatpush.bf16.msra.mxu0 %v484
        %556 = vmatmul.bf16.gmra.mxu0 %v345
        %v557 = vpop.f32.mrf.mxu0
        %v558 = vadd.f32 %v380, %v557
        %v559 = vpop.f32.mrf.mxu0
        %560 = vdwg.mxu0
        %561 = vmatpush.bf16.msra.mxu0 %v513
        %562 = vmatpush.bf16.msra.mxu0 %v509
        %563 = vmatpush.bf16.msra.mxu0 %v505
        %564 = vmatpush.bf16.msra.mxu0 %v501
        %565 = vmatpush.bf16.msra.mxu0 %v497
        %566 = vmatpush.bf16.msra.mxu0 %v493
        %567 = vmatpush.bf16.msra.mxu0 %v489
        %568 = vmatpush.bf16.msra.mxu0 %v485
        %569 = vmatmul.bf16.gmra.mxu0 %v345
        %v570 = vpop.f32.mrf.mxu0
        %v571 = vadd.f32 %v381, %v570
        %v572 = vpop.f32.mrf.mxu0
        %573 = vdwg.mxu0
        %574 = vmatpush.bf16.msra.mxu0 %v514
        %575 = vmatpush.bf16.msra.mxu0 %v510
        %576 = vmatpush.bf16.msra.mxu0 %v506
        %577 = vmatpush.bf16.msra.mxu0 %v502
        %578 = vmatpush.bf16.msra.mxu0 %v498
        %579 = vmatpush.bf16.msra.mxu0 %v494
        %580 = vmatpush.bf16.msra.mxu0 %v490
        %581 = vmatpush.bf16.msra.mxu0 %v486
        %582 = vmatmul.bf16.gmra.mxu0 %v345
        %v583 = vpop.f32.mrf.mxu0
        %v584 = vadd.f32 %v382, %v583
        %v585 = vpop.f32.mrf.mxu0
        %586 = vdwg.mxu0
        %587 = vmatpush.bf16.msra.mxu0 %v515
        %588 = vmatpush.bf16.msra.mxu0 %v511
        %589 = vmatpush.bf16.msra.mxu0 %v507
        %590 = vmatpush.bf16.msra.mxu0 %v503
        %591 = vmatpush.bf16.msra.mxu0 %v499
        %592 = vmatpush.bf16.msra.mxu0 %v495
        %593 = vmatpush.bf16.msra.mxu0 %v491
        %594 = vmatpush.bf16.msra.mxu0 %v487
        %595 = vmatmul.bf16.gmra.mxu0 %v345
        %v596 = vpop.f32.mrf.mxu0
        %v597 = vadd.f32 %v383, %v596
        %v598 = vpop.f32.mrf.mxu0
        %599 = vdwg.mxu0
        %v600 = vmax.f32 %v558, 0.0
        %v601 = vmax.f32 %v571, 0.0
        %v602 = vmax.f32 %v584, 0.0
        %v603 = vmax.f32 %v597, 0.0
        %v604 = vpack.c.bf16 %v600, %v600
        %v605 = vpack.c.bf16 %v601, %v601
        %v606 = vpack.c.bf16 %v602, %v602
        %v607 = vpack.c.bf16 %v603, %v603
        %v608 = vld [vmem:[#allocation8] sm:$0xf]
        %v609 = vld [vmem:[#allocation8 + $0x4] sm:$0xf]
        %v610 = vld [vmem:[#allocation8 + $0x8] sm:$0xf]
        %v611 = vld [vmem:[#allocation8 + $0xc] sm:$0xf]
        %v612 = vld [vmem:[#allocation8 + $0x10] sm:$0xf]
        %v613 = vld [vmem:[#allocation8 + $0x14] sm:$0xf]
        %v614 = vld [vmem:[#allocation8 + $0x18] sm:$0xf]
        %v615 = vld [vmem:[#allocation8 + $0x1c] sm:$0xf]
        %v616 = vld [vmem:[#allocation8 + $0x20] sm:$0xf]
        %v617 = vld [vmem:[#allocation8 + $0x24] sm:$0xf]
        %v618 = vld [vmem:[#allocation8 + $0x28] sm:$0xf]
        %v619 = vld [vmem:[#allocation8 + $0x2c] sm:$0xf]
        %v620 = vld [vmem:[#allocation8 + $0x30] sm:$0xf]
        %v621 = vld [vmem:[#allocation8 + $0x34] sm:$0xf]
        %v622 = vld [vmem:[#allocation8 + $0x38] sm:$0xf]
        %v623 = vld [vmem:[#allocation8 + $0x3c] sm:$0xf]
        %v624 = vld [vmem:[#allocation8 + $0x40] sm:$0xf]
        %v625 = vld [vmem:[#allocation8 + $0x44] sm:$0xf]
        %v626 = vld [vmem:[#allocation8 + $0x48] sm:$0xf]
        %v627 = vld [vmem:[#allocation8 + $0x4c] sm:$0xf]
        %v628 = vld [vmem:[#allocation8 + $0x50] sm:$0xf]
        %v629 = vld [vmem:[#allocation8 + $0x54] sm:$0xf]
        %v630 = vld [vmem:[#allocation8 + $0x58] sm:$0xf]
        %v631 = vld [vmem:[#allocation8 + $0x5c] sm:$0xf]
        %v632 = vld [vmem:[#allocation8 + $0x60] sm:$0xf]
        %v633 = vld [vmem:[#allocation8 + $0x64] sm:$0xf]
        %v634 = vld [vmem:[#allocation8 + $0x68] sm:$0xf]
        %v635 = vld [vmem:[#allocation8 + $0x6c] sm:$0xf]
        %v636 = vld [vmem:[#allocation8 + $0x70] sm:$0xf]
        %v637 = vld [vmem:[#allocation8 + $0x74] sm:$0xf]
        %v638 = vld [vmem:[#allocation8 + $0x78] sm:$0xf]
        %v639 = vld [vmem:[#allocation8 + $0x7c] sm:$0xf]
        %v640 = vld [vmem:[#allocation8 + $0x80] sm:$0xf]
        %v641 = vld [vmem:[#allocation8 + $0x84] sm:$0xf]
        %v642 = vld [vmem:[#allocation8 + $0x88] sm:$0xf]
        %v643 = vld [vmem:[#allocation8 + $0x8c] sm:$0xf]
        %v644 = vld [vmem:[#allocation8 + $0x90] sm:$0xf]
        %v645 = vld [vmem:[#allocation8 + $0x94] sm:$0xf]
        %v646 = vld [vmem:[#allocation8 + $0x98] sm:$0xf]
        %v647 = vld [vmem:[#allocation8 + $0x9c] sm:$0xf]
        %v648 = vld [vmem:[#allocation8 + $0xa0] sm:$0xf]
        %v649 = vld [vmem:[#allocation8 + $0xa4] sm:$0xf]
        %v650 = vld [vmem:[#allocation8 + $0xa8] sm:$0xf]
        %v651 = vld [vmem:[#allocation8 + $0xac] sm:$0xf]
        %v652 = vld [vmem:[#allocation8 + $0xb0] sm:$0xf]
        %v653 = vld [vmem:[#allocation8 + $0xb4] sm:$0xf]
        %v654 = vld [vmem:[#allocation8 + $0xb8] sm:$0xf]
        %v655 = vld [vmem:[#allocation8 + $0xbc] sm:$0xf]
        %v656 = vld [vmem:[#allocation8 + $0xc0] sm:$0xf]
        %v657 = vld [vmem:[#allocation8 + $0xc4] sm:$0xf]
        %v658 = vld [vmem:[#allocation8 + $0xc8] sm:$0xf]
        %v659 = vld [vmem:[#allocation8 + $0xcc] sm:$0xf]
        %v660 = vld [vmem:[#allocation8 + $0xd0] sm:$0xf]
        %v661 = vld [vmem:[#allocation8 + $0xd4] sm:$0xf]
        %v662 = vld [vmem:[#allocation8 + $0xd8] sm:$0xf]
        %v663 = vld [vmem:[#allocation8 + $0xdc] sm:$0xf]
        %v664 = vld [vmem:[#allocation8 + $0xe0] sm:$0xf]
        %v665 = vld [vmem:[#allocation8 + $0xe4] sm:$0xf]
        %v666 = vld [vmem:[#allocation8 + $0xe8] sm:$0xf]
        %v667 = vld [vmem:[#allocation8 + $0xec] sm:$0xf]
        %v668 = vld [vmem:[#allocation8 + $0xf0] sm:$0xf]
        %v669 = vld [vmem:[#allocation8 + $0xf4] sm:$0xf]
        %v670 = vld [vmem:[#allocation8 + $0xf8] sm:$0xf]
        %v671 = vld [vmem:[#allocation8 + $0xfc] sm:$0xf]
        %v672 = vld [vmem:[%s4] sm:$0x1]
        %v674 = vperm.slane %v672, 0
        %v740 = vunpack.c.l.b16 %v608
        %v741 = vunpack.c.l.b16 %v609
        %v742 = vunpack.c.l.b16 %v610
        %v743 = vunpack.c.l.b16 %v611
        %v744 = vunpack.c.l.b16 %v612
        %v745 = vunpack.c.l.b16 %v613
        %v746 = vunpack.c.l.b16 %v614
        %v747 = vunpack.c.l.b16 %v615
        %v748 = vunpack.c.l.b16 %v616
        %v749 = vunpack.c.l.b16 %v617
        %v750 = vunpack.c.l.b16 %v618
        %v751 = vunpack.c.l.b16 %v619
        %v752 = vunpack.c.l.b16 %v620
        %v753 = vunpack.c.l.b16 %v621
        %v754 = vunpack.c.l.b16 %v622
        %v755 = vunpack.c.l.b16 %v623
        %v756 = vunpack.c.l.b16 %v624
        %v757 = vunpack.c.l.b16 %v625
        %v758 = vunpack.c.l.b16 %v626
        %v759 = vunpack.c.l.b16 %v627
        %v760 = vunpack.c.l.b16 %v628
        %v761 = vunpack.c.l.b16 %v629
        %v762 = vunpack.c.l.b16 %v630
        %v763 = vunpack.c.l.b16 %v631
        %v764 = vunpack.c.l.b16 %v632
        %v765 = vunpack.c.l.b16 %v633
        %v766 = vunpack.c.l.b16 %v634
        %v767 = vunpack.c.l.b16 %v635
        %v768 = vunpack.c.l.b16 %v636
        %v769 = vunpack.c.l.b16 %v637
        %v770 = vunpack.c.l.b16 %v638
        %v771 = vunpack.c.l.b16 %v639
        %v772 = vunpack.c.l.b16 %v640
        %v773 = vunpack.c.l.b16 %v641
        %v774 = vunpack.c.l.b16 %v642
        %v775 = vunpack.c.l.b16 %v643
        %v776 = vunpack.c.l.b16 %v644
        %v777 = vunpack.c.l.b16 %v645
        %v778 = vunpack.c.l.b16 %v646
        %v779 = vunpack.c.l.b16 %v647
        %v780 = vunpack.c.l.b16 %v648
        %v781 = vunpack.c.l.b16 %v649
        %v782 = vunpack.c.l.b16 %v650
        %v783 = vunpack.c.l.b16 %v651
        %v784 = vunpack.c.l.b16 %v652
        %v785 = vunpack.c.l.b16 %v653
        %v786 = vunpack.c.l.b16 %v654
        %v787 = vunpack.c.l.b16 %v655
        %v788 = vunpack.c.l.b16 %v656
        %v789 = vunpack.c.l.b16 %v657
        %v790 = vunpack.c.l.b16 %v658
        %v791 = vunpack.c.l.b16 %v659
        %v792 = vunpack.c.l.b16 %v660
        %v793 = vunpack.c.l.b16 %v661
        %v794 = vunpack.c.l.b16 %v662
        %v795 = vunpack.c.l.b16 %v663
        %v796 = vunpack.c.l.b16 %v664
        %v797 = vunpack.c.l.b16 %v665
        %v798 = vunpack.c.l.b16 %v666
        %v799 = vunpack.c.l.b16 %v667
        %v800 = vunpack.c.l.b16 %v668
        %v801 = vunpack.c.l.b16 %v669
        %v802 = vunpack.c.l.b16 %v670
        %v803 = vunpack.c.l.b16 %v671
        %v804 = vpack.c.b16 %v741, %v740
        %v805 = vpack.c.b16 %v743, %v742
        %v806 = vpack.c.b16 %v745, %v744
        %v807 = vpack.c.b16 %v747, %v746
        %v808 = vpack.c.b16 %v749, %v748
        %v809 = vpack.c.b16 %v751, %v750
        %v810 = vpack.c.b16 %v753, %v752
        %v811 = vpack.c.b16 %v755, %v754
        %v812 = vpack.c.b16 %v757, %v756
        %v813 = vpack.c.b16 %v759, %v758
        %v814 = vpack.c.b16 %v761, %v760
        %v815 = vpack.c.b16 %v763, %v762
        %v816 = vpack.c.b16 %v765, %v764
        %v817 = vpack.c.b16 %v767, %v766
        %v818 = vpack.c.b16 %v769, %v768
        %v819 = vpack.c.b16 %v771, %v770
        %v820 = vpack.c.b16 %v773, %v772
        %v821 = vpack.c.b16 %v775, %v774
        %v822 = vpack.c.b16 %v777, %v776
        %v823 = vpack.c.b16 %v779, %v778
        %v824 = vpack.c.b16 %v781, %v780
        %v825 = vpack.c.b16 %v783, %v782
        %v826 = vpack.c.b16 %v785, %v784
        %v827 = vpack.c.b16 %v787, %v786
        %v828 = vpack.c.b16 %v789, %v788
        %v829 = vpack.c.b16 %v791, %v790
        %v830 = vpack.c.b16 %v793, %v792
        %v831 = vpack.c.b16 %v795, %v794
        %v832 = vpack.c.b16 %v797, %v796
        %v833 = vpack.c.b16 %v799, %v798
        %v834 = vpack.c.b16 %v801, %v800
        %v835 = vpack.c.b16 %v803, %v802
        %868 = vmatpush.bf16.msra.mxu0 %v811
        %869 = vmatpush.bf16.msra.mxu0 %v810
        %870 = vmatpush.bf16.msra.mxu0 %v809
        %871 = vmatpush.bf16.msra.mxu0 %v808
        %872 = vmatpush.bf16.msra.mxu0 %v807
        %873 = vmatpush.bf16.msra.mxu0 %v806
        %874 = vmatpush.bf16.msra.mxu0 %v805
        %875 = vmatpush.bf16.msra.mxu0 %v804
        %876 = vmatmul.bf16.gmra.mxu0 %v604
        %v877 = vpop.f32.mrf.mxu0
        %v878 = vadd.f32 %v674, %v877
        %v879 = vpop.f32.mrf.mxu0
        %880 = vdwg.mxu0
        %881 = vmatpush.bf16.msra.mxu0 %v819
        %882 = vmatpush.bf16.msra.mxu0 %v818
        %883 = vmatpush.bf16.msra.mxu0 %v817
        %884 = vmatpush.bf16.msra.mxu0 %v816
        %885 = vmatpush.bf16.msra.mxu0 %v815
        %886 = vmatpush.bf16.msra.mxu0 %v814
        %887 = vmatpush.bf16.msra.mxu0 %v813
        %888 = vmatpush.bf16.msra.mxu0 %v812
        %889 = vmatmul.bf16.gmra.mxu0 %v605
        %v890 = vpop.f32.mrf.mxu0
        %v891 = vadd.f32 %v878, %v890
        %v892 = vpop.f32.mrf.mxu0
        %893 = vdwg.mxu0
        %894 = vmatpush.bf16.msra.mxu0 %v827
        %895 = vmatpush.bf16.msra.mxu0 %v826
        %896 = vmatpush.bf16.msra.mxu0 %v825
        %897 = vmatpush.bf16.msra.mxu0 %v824
        %898 = vmatpush.bf16.msra.mxu0 %v823
        %899 = vmatpush.bf16.msra.mxu0 %v822
        %900 = vmatpush.bf16.msra.mxu0 %v821
        %901 = vmatpush.bf16.msra.mxu0 %v820
        %902 = vmatmul.bf16.gmra.mxu0 %v606
        %v903 = vpop.f32.mrf.mxu0
        %v904 = vadd.f32 %v891, %v903
        %v905 = vpop.f32.mrf.mxu0
        %906 = vdwg.mxu0
        %907 = vmatpush.bf16.msra.mxu0 %v835
        %908 = vmatpush.bf16.msra.mxu0 %v834
        %909 = vmatpush.bf16.msra.mxu0 %v833
        %910 = vmatpush.bf16.msra.mxu0 %v832
        %911 = vmatpush.bf16.msra.mxu0 %v831
        %912 = vmatpush.bf16.msra.mxu0 %v830
        %913 = vmatpush.bf16.msra.mxu0 %v829
        %914 = vmatpush.bf16.msra.mxu0 %v828
        %915 = vmatmul.bf16.gmra.mxu0 %v607
        %v916 = vpop.f32.mrf.mxu0
        %v917 = vadd.f32 %v904, %v916
        %v918 = vpop.f32.mrf.mxu0
        %919 = vdwg.mxu0
        %v920 = vadd.f32 %v917, %v344
        %921 = vadd.xlane.f32.xlu0 %v920
        %v922 = vpop.xlane.xlu0 %921
        %v923 = vmul.f32 %v922, 0.0078125
        %v924 = vsub.f32 %v920, %v923
        %v925 = vmul.f32 %v924, %v924
        %926 = vadd.xlane.f32.xlu0 %v925
        %v927 = vpop.xlane.xlu0 %926
        %v928 = vmul.f32 %v927, 0.0078125
        %v929 = vadd.f32 %v928, 1e-05
        %v930 = vrsqrt.pop %v929
        %v931 = vmul.f32 %v930, %v929
        %v932 = vmul.f32 %v931, %v930
        %v933 = vmul.f32 0.5, %v932
        %v934 = vsub.f32 1.5, %v933
        %v935 = vmul.f32 %v930, %v934
        %vm936 = vweird.f32 %v929
        %vm937 = vweird.f32 %v930
        %vm938 = vmor %vm936, %vm937
        %v939 = vsel %vm938, %v930, %v935
        %v940 = vmul.f32 %v924, %v939
        %v941 = vld [vmem:[%s5] sm:$0x1]
        %v943 = vperm.slane %v941, 0
        %v945 = vmul.f32 %v940, %v943
        %v946 = vld [vmem:[%s6] sm:$0x1]
        %v948 = vperm.slane %v946, 0
        %v950 = vadd.f32 %v945, %v948
        %951 = vst [vmem:[%s343] sm:$0xff] %v950
        %s952 = sand.u32 %s186, 1
        %s953 = scalar_lea.sflag [#allocation4], %s952
        %s954 = sand.u32 %s186, 1
        %s955 = smul.addr %s954, 8
        %s956 = scalar_lea.vmem [#allocation10], %s955
        // Predicated region
        $region65: #{tpu_custom_call.1} parent=47 // pred_check
          %p957 = pneg %p196
        $region66: #{tpu_custom_call.1} parent=47 // pred_check_branch
          %959 = sbr.rel (%p957) target = $region68
        $region67: #{tpu_custom_call.1} parent=47 // pred_region
          %961 = vsyncadd %s953, 0
          %s962 = smul.addr %s26, 8
          %s963 = scalar_lea.hbm %s7, %s962
          %s965 = sshll.u32 %s956, 4
          %s966 = int_to_ptr.vmem [resolvable:$true] %s965
          %s967 = sshll.u32 %s963, 4
          %s968 = int_to_ptr.hbm [resolvable:$true] %s967
          %970 = dma.vmem_to_hbm [thread:$0]  %s966, 128, %s968, %s953
        $region68: #{tpu_custom_call.1} parent=47 // pred_fallthru
          _
      $region48: #{tpu_custom_call.1} parent=5 // pred_fallthru
        _
      %p971 = scmp.le.s32.totalorder 2, %s21
      // Predicated region
      $region69: #{tpu_custom_call.1} parent=5 // pred_check
        %p972 = pneg %p971
      $region70: #{tpu_custom_call.1} parent=5 // pred_check_branch
        %974 = sbr.rel (%p972) target = $region72
      $region71: #{tpu_custom_call.1} parent=5 // pred_region
        %s975 = ssub.s32 %s21, 2
        // Predicated region
        $region73: #{tpu_custom_call.1} parent=71 // pred_check
          %p976 = pneg %p202
        $region74: #{tpu_custom_call.1} parent=71 // pred_check_branch
          %978 = sbr.rel (%p976) target = $region76
        $region75: #{tpu_custom_call.1} parent=71 // pred_region
          %s979 = sand.u32 %s187, 1
          %s980 = scalar_lea.sflag [#allocation4], %s979
          %s981 = sand.u32 %s187, 1
          %s982 = smul.addr %s981, 8
          %s983 = scalar_lea.vmem [#allocation10], %s982
          %985 = dma.done %s980, 128
        $region76: #{tpu_custom_call.1} parent=71 // pred_fallthru
          _
      $region72: #{tpu_custom_call.1} parent=5 // pred_fallthru
        _
    $region6: #{tpu_custom_call.1} parent=1 // loop_footer
      %s25 = sadd.s32 1, %s21
    $region7: #{tpu_custom_call.1} parent=1 // loop_footer_branch
      %20 = sbr.rel target = $region3
    $region8: #{tpu_custom_call.1} parent=1 // loop_exit
      _
    %986 = vsyncpa [#allocation3], 1
    %s987 = scalar_lea.sflag [#allocation3], 1
    %988 = vsyncpa %s987, 1
    %989 = vsyncpa [#allocation6], 1
    %990 = vsyncpa [#allocation9], 1
    %991 = vsyncpa [#allocation4], 1
    %s992 = scalar_lea.sflag [#allocation4], 1
    %993 = vsyncpa %s992, 1

</llo_original>
